<compile_context>
chip_gen: v7x
topology: tpu7x:2x2x1
jax: 0.10.0
libtpu: 0.0.40
codegen_flags: <defaults>
</compile_context>

<pallas_src>
import jax
import jax.numpy as jnp
from jax.experimental import pallas as pl
from jax.experimental.pallas import tpu as pltpu

_LANE = 128


def _round_up(x, m):
    return ((x + m - 1) // m) * m


def _sublane(dtype):
    # f32 -> 8, bf16 -> 16, int8/fp8 -> 32 (packed sublane size).
    return 8 * max(1, 4 // jnp.dtype(dtype).itemsize)


def prepare_bilinear_weight(w):
    """One-time (parameter-init-time) weight prep: (D, D, K) -> (D*D, k_pad).

    k_pad = round_up(K, 128) so the kernel's output stores are lane-dense and
    unmasked. Call once and reuse across forward calls (hoisted out of the
    per-call path per the performance review).
    """
    D, D2, K = w.shape
    assert D == D2, "weight must be (input_dim, input_dim, output_dim)"
    k_pad = _round_up(K, _LANE)
    return jnp.pad(w, ((0, 0), (0, 0), (0, k_pad - K))).reshape(D * D, k_pad)


def _bilinear_kernel(x_ref, w_ref, o_ref, xx_ref):
    # x_ref : (tb, D)      activation tile (native dtype)
    # w_ref : (D*D, tk)    flattened weight (VMEM-resident or streamed K tile)
    # o_ref : (tb, tk)     lane-dense output tile (unmasked stores)
    # xx_ref: (tb, D*D)    f32 VMEM scratch for the per-row outer product
    D = x_ref.shape[1]
    xf = x_ref[...].astype(jnp.float32)  # single cast, hoisted out of the loop

    # xx[b, i*D + j] = x[b, i] * x[b, j].  D is a small static constant, so
    # this unrolls into D slice stores (no in-kernel reshape / concat needed).
    for i in range(D):
        xx_ref[:, i * D:(i + 1) * D] = xf[:, i:i + 1] * xf

    # Single MXU matmul over the D*D contraction, f32 accumulation.
    o_ref[...] = jnp.dot(
        xx_ref[...],
        w_ref[...],
        preferred_element_type=jnp.float32,
        precision=jax.lax.Precision.HIGHEST,
    ).astype(o_ref.dtype)


def bilinear_layer(x, w_flat, output_dim, *, batch_tile=512):
    """Y[b,k] = sum_{i,j} W[i,j,k] x[b,i] x[b,j]; w_flat = prepare_bilinear_weight(W)."""
    B, D = x.shape
    DD, k_pad = w_flat.shape
    assert DD == D * D and k_pad % _LANE == 0
    K = output_dim
    assert K <= k_pad

    # ---- batch tiling: minimal padding (sublane-aligned per-tile size) ----
    sub = _sublane(x.dtype)
    n_b = max(1, pl.cdiv(B, batch_tile))
    tb = _round_up(pl.cdiv(B, n_b), sub)
    b_pad = n_b * tb
    x_p = jnp.pad(x, ((0, b_pad - B), (0, 0))) if b_pad != B else x

    # ---- weight residency / K tiling ----
    w_itemsize = jnp.dtype(w_flat.dtype).itemsize
    x_itemsize = jnp.dtype(x.dtype).itemsize
    w_bytes = DD * k_pad * w_itemsize
    resident = w_bytes <= (16 << 20)  # whole weight resident in VMEM, 1 copy
    if resident:
        tk, n_k = k_pad, 1
        # memory_space=VMEM, no block_shape -> copied to VMEM once, no
        # double-buffering of the constant weight block.
        w_spec = pl.BlockSpec(memory_space=pltpu.MemorySpace.VMEM)
    else:
        # Largest lane-multiple tile that divides k_pad with tile <= 8 MiB
        # (<= 16 MiB of weight in VMEM while double-buffered streaming).
        target = max(_LANE, ((8 << 20) // (DD * w_itemsize)) // _LANE * _LANE)
        tk = _LANE
        cand = _LANE
        while cand <= min(k_pad, target):
            if k_pad % cand == 0:
                tk = cand
            cand += _LANE
        n_k = k_pad // tk
        # K is the OUTER grid axis so every weight tile is DMA'd only once.
        w_spec = pl.BlockSpec((DD, tk), lambda k, b: (0, k))

    # ---- explicit VMEM budget (v5e scoped default 16 MiB; v7x 64 MiB/TC) ----
    est = ((1 if resident else 2) * DD * tk * w_itemsize   # weight buffer(s)
           + 2 * tb * D * x_itemsize                       # x double-buffer
           + 2 * tb * tk * x_itemsize                      # out double-buffer
           + tb * DD * 4)                                  # xx scratch
    vmem_limit = int(min(max(2 * est, 32 << 20), 64 << 20))

    out = pl.pallas_call(
        _bilinear_kernel,
        out_shape=jax.ShapeDtypeStruct((b_pad, k_pad), x.dtype),
        grid=(n_k, n_b),
        in_specs=[
            pl.BlockSpec((tb, D), lambda k, b: (b, 0)),
            w_spec,
        ],
        out_specs=pl.BlockSpec((tb, tk), lambda k, b: (b, k)),
        scratch_shapes=[pltpu.VMEM((tb, DD), jnp.float32)],
        compiler_params=pltpu.CompilerParams(
            dimension_semantics=("parallel", "parallel"),
            vmem_limit_bytes=vmem_limit,
        ),
    )(x_p, w_flat)

    # Drop batch padding and lane padding.
    return out[:B, :K]


if __name__ == "__main__":
    # Small shapes consistent with the module: X = (batch=2, input_dim=8),
    # output_dim = 4. Deterministic init from PRNGKey(0).
    batch, input_dim, output_dim = 2, 8, 4

    key = jax.random.PRNGKey(0)
    kx, kw = jax.random.split(key)
    x = jax.random.normal(kx, (batch, input_dim), dtype=jnp.float32)
    w = jax.random.normal(kw, (input_dim, input_dim, output_dim), dtype=jnp.float32)

    w_flat = prepare_bilinear_weight(w)        # hoisted out of the call path
    y = bilinear_layer(x, w_flat, output_dim)
    y = jax.block_until_ready(y)

    y_ref = jnp.einsum('bi,bj,ijk->bk', x, x, w,
                       precision=jax.lax.Precision.HIGHEST)
    assert y.shape == (batch, output_dim)
    assert jnp.allclose(y, y_ref, atol=1e-3, rtol=1e-3), "mismatch vs reference"

    print("KERNEL_OK")
</pallas_src>

<mosaic_0001>
module attributes {stable_mosaic.version = 11 : i64} {
  func.func @_bilinear_kernel(%arg0: i32, %arg1: i32, %arg2: memref<8x8xf32, #tpu.memory_space<vmem>>, %arg3: memref<64x128xf32, #tpu.memory_space<vmem>>, %arg4: memref<8x128xf32, #tpu.memory_space<vmem>>, %arg5: memref<8x64xf32, #tpu.memory_space<vmem>>) attributes {dimension_semantics = [#tpu.dimension_semantics<parallel>, #tpu.dimension_semantics<parallel>], iteration_bounds = array<i64: 1, 1>, scalar_prefetch = 0 : i64, scratch_operands = 1 : i64, tpu.core_type = #tpu.core_type<tc>, window_params = [{transform_indices = @transform_0, window_bounds = array<i64: 8, 8>}, {pipeline_mode = #tpu.pipeline_mode<synchronous>, transform_indices = @transform_1, window_bounds = array<i64: 64, 128>}, {transform_indices = @transform_2, window_bounds = array<i64: 8, 128>}]} {
    %c0 = arith.constant 0 : index
    %c0_0 = arith.constant 0 : index
    %0 = vector.load %arg2[%c0, %c0_0] : memref<8x8xf32, #tpu.memory_space<vmem>>, vector<8x8xf32>
    %1 = vector.extract_strided_slice %0 {offsets = [0, 0], sizes = [8, 1], strides = [1, 1]} : vector<8x8xf32> to vector<8x1xf32>
    %2 = vector.broadcast %1 : vector<8x1xf32> to vector<8x8xf32>
    %3 = arith.mulf %2, %0 : vector<8x8xf32>
    %c0_1 = arith.constant 0 : index
    %c0_2 = arith.constant 0 : index
    %4 = vector.load %arg5[%c0_1, %c0_2] : memref<8x64xf32, #tpu.memory_space<vmem>>, vector<8x8xf32>
    tpu.vector_store %arg5[%c0_1, %c0_2], %3 {strides = array<i32>} : memref<8x64xf32, #tpu.memory_space<vmem>>, vector<8x8xf32>,
    %5 = vector.extract_strided_slice %0 {offsets = [0, 1], sizes = [8, 1], strides = [1, 1]} : vector<8x8xf32> to vector<8x1xf32>
    %6 = vector.broadcast %5 : vector<8x1xf32> to vector<8x8xf32>
    %7 = arith.mulf %6, %0 : vector<8x8xf32>
    %c0_3 = arith.constant 0 : index
    %c8 = arith.constant 8 : index
    %8 = vector.load %arg5[%c0_3, %c8] : memref<8x64xf32, #tpu.memory_space<vmem>>, vector<8x8xf32>
    tpu.vector_store %arg5[%c0_3, %c8], %7 {strides = array<i32>} : memref<8x64xf32, #tpu.memory_space<vmem>>, vector<8x8xf32>,
    %9 = vector.extract_strided_slice %0 {offsets = [0, 2], sizes = [8, 1], strides = [1, 1]} : vector<8x8xf32> to vector<8x1xf32>
    %10 = vector.broadcast %9 : vector<8x1xf32> to vector<8x8xf32>
    %11 = arith.mulf %10, %0 : vector<8x8xf32>
    %c0_4 = arith.constant 0 : index
    %c16 = arith.constant 16 : index
    %12 = vector.load %arg5[%c0_4, %c16] : memref<8x64xf32, #tpu.memory_space<vmem>>, vector<8x8xf32>
    tpu.vector_store %arg5[%c0_4, %c16], %11 {strides = array<i32>} : memref<8x64xf32, #tpu.memory_space<vmem>>, vector<8x8xf32>,
    %13 = vector.extract_strided_slice %0 {offsets = [0, 3], sizes = [8, 1], strides = [1, 1]} : vector<8x8xf32> to vector<8x1xf32>
    %14 = vector.broadcast %13 : vector<8x1xf32> to vector<8x8xf32>
    %15 = arith.mulf %14, %0 : vector<8x8xf32>
    %c0_5 = arith.constant 0 : index
    %c24 = arith.constant 24 : index
    %16 = vector.load %arg5[%c0_5, %c24] : memref<8x64xf32, #tpu.memory_space<vmem>>, vector<8x8xf32>
    tpu.vector_store %arg5[%c0_5, %c24], %15 {strides = array<i32>} : memref<8x64xf32, #tpu.memory_space<vmem>>, vector<8x8xf32>,
    %17 = vector.extract_strided_slice %0 {offsets = [0, 4], sizes = [8, 1], strides = [1, 1]} : vector<8x8xf32> to vector<8x1xf32>
    %18 = vector.broadcast %17 : vector<8x1xf32> to vector<8x8xf32>
    %19 = arith.mulf %18, %0 : vector<8x8xf32>
    %c0_6 = arith.constant 0 : index
    %c32 = arith.constant 32 : index
    %20 = vector.load %arg5[%c0_6, %c32] : memref<8x64xf32, #tpu.memory_space<vmem>>, vector<8x8xf32>
    tpu.vector_store %arg5[%c0_6, %c32], %19 {strides = array<i32>} : memref<8x64xf32, #tpu.memory_space<vmem>>, vector<8x8xf32>,
    %21 = vector.extract_strided_slice %0 {offsets = [0, 5], sizes = [8, 1], strides = [1, 1]} : vector<8x8xf32> to vector<8x1xf32>
    %22 = vector.broadcast %21 : vector<8x1xf32> to vector<8x8xf32>
    %23 = arith.mulf %22, %0 : vector<8x8xf32>
    %c0_7 = arith.constant 0 : index
    %c40 = arith.constant 40 : index
    %24 = vector.load %arg5[%c0_7, %c40] : memref<8x64xf32, #tpu.memory_space<vmem>>, vector<8x8xf32>
    tpu.vector_store %arg5[%c0_7, %c40], %23 {strides = array<i32>} : memref<8x64xf32, #tpu.memory_space<vmem>>, vector<8x8xf32>,
    %25 = vector.extract_strided_slice %0 {offsets = [0, 6], sizes = [8, 1], strides = [1, 1]} : vector<8x8xf32> to vector<8x1xf32>
    %26 = vector.broadcast %25 : vector<8x1xf32> to vector<8x8xf32>
    %27 = arith.mulf %26, %0 : vector<8x8xf32>
    %c0_8 = arith.constant 0 : index
    %c48 = arith.constant 48 : index
    %28 = vector.load %arg5[%c0_8, %c48] : memref<8x64xf32, #tpu.memory_space<vmem>>, vector<8x8xf32>
    tpu.vector_store %arg5[%c0_8, %c48], %27 {strides = array<i32>} : memref<8x64xf32, #tpu.memory_space<vmem>>, vector<8x8xf32>,
    %29 = vector.extract_strided_slice %0 {offsets = [0, 7], sizes = [8, 1], strides = [1, 1]} : vector<8x8xf32> to vector<8x1xf32>
    %30 = vector.broadcast %29 : vector<8x1xf32> to vector<8x8xf32>
    %31 = arith.mulf %30, %0 : vector<8x8xf32>
    %c0_9 = arith.constant 0 : index
    %c56 = arith.constant 56 : index
    %32 = vector.load %arg5[%c0_9, %c56] : memref<8x64xf32, #tpu.memory_space<vmem>>, vector<8x8xf32>
    tpu.vector_store %arg5[%c0_9, %c56], %31 {strides = array<i32>} : memref<8x64xf32, #tpu.memory_space<vmem>>, vector<8x8xf32>,
    %c0_10 = arith.constant 0 : index
    %c0_11 = arith.constant 0 : index
    %33 = vector.load %arg5[%c0_10, %c0_11] : memref<8x64xf32, #tpu.memory_space<vmem>>, vector<8x64xf32>
    %c0_12 = arith.constant 0 : index
    %c0_13 = arith.constant 0 : index
    %34 = vector.load %arg3[%c0_12, %c0_13] : memref<64x128xf32, #tpu.memory_space<vmem>>, vector<64x128xf32>
    %cst = arith.constant dense<0.000000e+00> : vector<8x128xf32>
    %35 = tpu.matmul %33, %34, %cst {dimension_numbers = #tpu.dot_dimension_numbers<[1], [0], [0], [1], [0, 0, 1, 1], [], []>, precision = #tpu.contract_precision<fp32>} : vector<8x64xf32>, vector<64x128xf32>, vector<8x128xf32> -> vector<8x128xf32>
    %c0_14 = arith.constant 0 : index
    %c0_15 = arith.constant 0 : index
    %36 = vector.load %arg4[%c0_14, %c0_15] : memref<8x128xf32, #tpu.memory_space<vmem>>, vector<8x128xf32>
    tpu.vector_store %arg4[%c0_14, %c0_15], %35 {strides = array<i32>} : memref<8x128xf32, #tpu.memory_space<vmem>>, vector<8x128xf32>,
    return
  }
  func.func @transform_0(%arg0: i32, %arg1: i32) -> (i32, i32) {
    %c0_i32 = arith.constant 0 : i32
    %c0_i32_0 = arith.constant 0 : i32
    return %arg1, %c0_i32 : i32, i32
  }
  func.func @transform_1(%arg0: i32, %arg1: i32) -> (i32, i32) {
    %c0_i32 = arith.constant 0 : i32
    %c0_i32_0 = arith.constant 0 : i32
    %c0_i32_1 = arith.constant 0 : i32
    return %c0_i32, %c0_i32_0 : i32, i32
  }
  func.func @transform_2(%arg0: i32, %arg1: i32) -> (i32, i32) {
    %c0_i32 = arith.constant 0 : i32
    return %arg1, %arg0 : i32, i32
  }
}

</mosaic_0001>

<llo_original>
// kernel: tpu_custom_call.1
$region0: #{tpu_custom_call.1}
  #allocation0 [shape = 'u32[]', space=smem, size = 0x4, offset = 0x4, fixed_abs, tag = 'smem constant byte address 0x4 - core index']
  #allocation1 [shape = 'u32[144,128]{1,0:T(1,128)}', space=vmem, size = 0x12000, scoped, tag = 'internal scratch']
  #allocation2 [shape = 'f32[8,64]{1,0:T(8,128)}', space=vmem, size = 0x1000, scoped, tag = 'scratch operand']
  %s0 = inlined_call_operand.hbm [shape: f32[8,8], index: 0, kind: input, shape index: {}]
  %s1 = inlined_call_operand.hbm [shape: f32[64,128], index: 1, kind: input, shape index: {}]
  %s2 = inlined_call_operand.hbm [shape: f32[8,128], index: 2, kind: output, shape index: {}]
  %s3 = sld [smem:[#allocation0]]
  $region26: #{tpu_custom_call.1} parent=0
    _
  %s5 = ssub.s32 1, %s3
  %s6 = scalar_select 0, %s5, %s3
  $region1: #{tpu_custom_call.1} parent=0
    #allocation3 [shape = 'u8[4096]{0}', space=vmem, size = 0x1000, scoped, tag = 'input window, operand 0, single buffered']
    #allocation4 [shape = 's32[1]{0}', space=sflag, size = 0x4, scoped, tag = 'scoped memory for tpu_custom_call.1']
    #allocation5 [shape = 's32[1]{0}', space=sflag, size = 0x4, scoped, tag = 'scoped memory for tpu_custom_call.1']
    #allocation6 [shape = 'u8[32768]{0}', space=vmem, size = 0x8000, scoped, tag = 'input window, operand 1, single buffered']
    #allocation7 [shape = 's32[1]{0}', space=sflag, size = 0x4, scoped, tag = 'scoped memory for tpu_custom_call.1']
    #allocation8 [shape = 'u8[4096]{0}', space=vmem, size = 0x1000, scoped, tag = 'output window, operand 0, single buffered']
    %7 = vsyncpa [#allocation4], 0
    %8 = vsyncpa [#allocation7], 0
    %9 = vsyncpa [#allocation5], 0
    // Predicated region
    $region2: #{tpu_custom_call.1} parent=1 // pred_check
      _
    $region3: #{tpu_custom_call.1} parent=1 // pred_check_branch
      %11 = sbr.rel (0) target = $region5
    $region4: #{tpu_custom_call.1} parent=1 // pred_region
      %s13 = ssub.s32 128, 128
      %14 = vsyncadd [#allocation4], %s13
      %s16 = sshll.u32 [#allocation3], 4
      %s17 = int_to_ptr.vmem [resolvable:$true] %s16
      %19 = dma.hbm_to_vmem [thread:$0]  %s0, 128, %s17, [#allocation4]
    $region5: #{tpu_custom_call.1} parent=1 // pred_fallthru
      _
    // Predicated region
    $region6: #{tpu_custom_call.1} parent=1 // pred_check
      _
    $region7: #{tpu_custom_call.1} parent=1 // pred_check_branch
      %21 = sbr.rel (0) target = $region9
    $region8: #{tpu_custom_call.1} parent=1 // pred_region
      %s23 = ssub.s32 1024, 1024
      %24 = vsyncadd [#allocation7], %s23
      %s25 = sshll.u32 [#allocation6], 4
      %s26 = int_to_ptr.vmem [resolvable:$true] %s25
      %31 = dma.hbm_to_vmem [thread:$0]  %s1, 1024, %s26, [#allocation7], 128, 128, 8
    $region9: #{tpu_custom_call.1} parent=1 // pred_fallthru
      _
    // Predicated region
    $region10: #{tpu_custom_call.1} parent=1 // pred_check
      _
    $region11: #{tpu_custom_call.1} parent=1 // pred_check_branch
      %33 = sbr.rel (0) target = $region13
    $region12: #{tpu_custom_call.1} parent=1 // pred_region
      %34 = dma.done [#allocation4], 128
    $region13: #{tpu_custom_call.1} parent=1 // pred_fallthru
      _
    // Predicated region
    $region14: #{tpu_custom_call.1} parent=1 // pred_check
      _
    $region15: #{tpu_custom_call.1} parent=1 // pred_check_branch
      %36 = sbr.rel (0) target = $region17
    $region16: #{tpu_custom_call.1} parent=1 // pred_region
      %37 = dma.done [#allocation7], 1024
    $region17: #{tpu_custom_call.1} parent=1 // pred_fallthru
      _
    %v38 = vld [vmem:[#allocation3] sm:$0xff]
    %40 = vset.pattern.permute.xlu0 0
    %41 = vperm.xlu0 %40, %v38
    %v42 = vpop.permute.xlu0 %41
    %v44 = vmul.f32 %v42, %v38
    %vm45 = vcmask 64512
    %46 = vst.msk [vmem:[#allocation2] sm:$0xff] %vm45, %v44
    %47 = vset.pattern.permute.xlu0 1
    %48 = vperm.xlu0 %47, %v38
    %v49 = vpop.permute.xlu0 %48
    %v51 = vmul.f32 %v49, %v38
    %53 = vrot.lane.b32.xlu0 %v51, 8
    %v54 = vpop.permute.xlu0 %53
    %vm56 = vcmask 130112
    %57 = vst.msk [vmem:[#allocation2] sm:$0xff] %vm56, %v54
    %58 = vset.pattern.permute.xlu0 2
    %59 = vperm.xlu0 %58, %v38
    %v60 = vpop.permute.xlu0 %59
    %v62 = vmul.f32 %v60, %v38
    %64 = vrot.lane.b32.xlu0 %v62, 16
    %v65 = vpop.permute.xlu0 %64
    %vm67 = vcmask 195712
    %68 = vst.msk [vmem:[#allocation2] sm:$0xff] %vm67, %v65
    %69 = vset.pattern.permute.xlu0 3
    %70 = vperm.xlu0 %69, %v38
    %v71 = vpop.permute.xlu0 %70
    %v73 = vmul.f32 %v71, %v38
    %75 = vrot.lane.b32.xlu0 %v73, 24
    %v76 = vpop.permute.xlu0 %75
    %vm78 = vcmask 261312
    %79 = vst.msk [vmem:[#allocation2] sm:$0xff] %vm78, %v76
    %80 = vset.pattern.permute.xlu0 4
    %81 = vperm.xlu0 %80, %v38
    %v82 = vpop.permute.xlu0 %81
    %v84 = vmul.f32 %v82, %v38
    %86 = vrot.lane.b32.xlu0 %v84, 32
    %v87 = vpop.permute.xlu0 %86
    %vm89 = vcmask 326912
    %90 = vst.msk [vmem:[#allocation2] sm:$0xff] %vm89, %v87
    %91 = vset.pattern.permute.xlu0 5
    %92 = vperm.xlu0 %91, %v38
    %v93 = vpop.permute.xlu0 %92
    %v95 = vmul.f32 %v93, %v38
    %97 = vrot.lane.b32.xlu0 %v95, 40
    %v98 = vpop.permute.xlu0 %97
    %vm100 = vcmask 392512
    %101 = vst.msk [vmem:[#allocation2] sm:$0xff] %vm100, %v98
    %102 = vset.pattern.permute.xlu0 6
    %103 = vperm.xlu0 %102, %v38
    %v104 = vpop.permute.xlu0 %103
    %v106 = vmul.f32 %v104, %v38
    %108 = vrot.lane.b32.xlu0 %v106, 48
    %v109 = vpop.permute.xlu0 %108
    %vm111 = vcmask 458112
    %112 = vst.msk [vmem:[#allocation2] sm:$0xff] %vm111, %v109
    %113 = vset.pattern.permute.xlu0 7
    %114 = vperm.xlu0 %113, %v38
    %v115 = vpop.permute.xlu0 %114
    %v117 = vmul.f32 %v115, %v38
    %119 = vrot.lane.b32.xlu0 %v117, 56
    %v120 = vpop.permute.xlu0 %119
    %vm122 = vcmask 523712
    %123 = vst.msk [vmem:[#allocation2] sm:$0xff] %vm122, %v120
    %v124 = vld [vmem:[#allocation2] sm:$0xff]
    %v125 = vld [vmem:[#allocation6] sm:$0xff]
    %v126 = vld [vmem:[#allocation6 + $0x8] sm:$0xff]
    %v127 = vld [vmem:[#allocation6 + $0x10] sm:$0xff]
    %v128 = vld [vmem:[#allocation6 + $0x18] sm:$0xff]
    %v129 = vld [vmem:[#allocation6 + $0x20] sm:$0xff]
    %v130 = vld [vmem:[#allocation6 + $0x28] sm:$0xff]
    %v131 = vld [vmem:[#allocation6 + $0x30] sm:$0xff]
    %v132 = vld [vmem:[#allocation6 + $0x38] sm:$0xff]
    %vm133 = vcmask 523264
    %v135 = vsel %vm133, %v124, 0
    %137 = vmatprep.subr.mxu0 0.0
    %v138 = vand.u32 %v125, 4294901760
    %139 = vmatpush1.msra.mxu0 %v138
    %140 = vmatprep.subr.mxu0 0.0
    %v141 = vand.u32 %v126, 4294901760
    %142 = vmatpush1.msra.mxu0 %v141
    %143 = vmatprep.subr.mxu0 0.0
    %v144 = vand.u32 %v127, 4294901760
    %145 = vmatpush1.msra.mxu0 %v144
    %146 = vmatprep.subr.mxu0 0.0
    %v147 = vand.u32 %v128, 4294901760
    %148 = vmatpush1.msra.mxu0 %v147
    %149 = vmatprep.subr.mxu0 0.0
    %v150 = vand.u32 %v129, 4294901760
    %151 = vmatpush1.msra.mxu0 %v150
    %152 = vmatprep.subr.mxu0 0.0
    %v153 = vand.u32 %v130, 4294901760
    %154 = vmatpush1.msra.mxu0 %v153
    %155 = vmatprep.subr.mxu0 0.0
    %v156 = vand.u32 %v131, 4294901760
    %157 = vmatpush1.msra.mxu0 %v156
    %158 = vmatprep.subr.mxu0 0.0
    %v159 = vand.u32 %v132, 4294901760
    %160 = vmatpush1.msra.mxu0 %v159
    %161 = vmatprep.subr.mxu0 0.0
    %162 = vmatpush1.msra.mxu0 0.0
    %163 = vmatprep.subr.mxu0 0.0
    %164 = vmatpush1.msra.mxu0 0.0
    %165 = vmatprep.subr.mxu0 0.0
    %166 = vmatpush1.msra.mxu0 0.0
    %167 = vmatprep.subr.mxu0 0.0
    %168 = vmatpush1.msra.mxu0 0.0
    %169 = vmatprep.subr.mxu0 0.0
    %170 = vmatpush1.msra.mxu0 0.0
    %171 = vmatprep.subr.mxu0 0.0
    %172 = vmatpush1.msra.mxu0 0.0
    %173 = vmatprep.subr.mxu0 0.0
    %174 = vmatpush1.msra.mxu0 0.0
    %175 = vmatprep.subr.mxu0 0.0
    %176 = vmatpush1.msra.mxu0 0.0
    %177 = vmatprep.subr.mxu0 0.0
    %178 = vmatpush1.msra.mxu0 0.0
    %179 = vmatprep.subr.mxu0 0.0
    %180 = vmatpush1.msra.mxu0 0.0
    %181 = vmatprep.subr.mxu0 0.0
    %182 = vmatpush1.msra.mxu0 0.0
    %183 = vmatprep.subr.mxu0 0.0
    %184 = vmatpush1.msra.mxu0 0.0
    %185 = vmatprep.subr.mxu0 0.0
    %186 = vmatpush1.msra.mxu0 0.0
    %187 = vmatprep.subr.mxu0 0.0
    %188 = vmatpush1.msra.mxu0 0.0
    %189 = vmatprep.subr.mxu0 0.0
    %190 = vmatpush1.msra.mxu0 0.0
    %191 = vmatprep.subr.mxu0 0.0
    %192 = vmatpush1.msra.mxu0 0.0
    %193 = vmatprep.subr.mxu0 0.0
    %194 = vmatpush1.msra.mxu0 0.0
    %195 = vmatprep.subr.mxu0 0.0
    %196 = vmatpush1.msra.mxu0 0.0
    %197 = vmatprep.subr.mxu0 0.0
    %198 = vmatpush1.msra.mxu0 0.0
    %199 = vmatprep.subr.mxu0 0.0
    %200 = vmatpush1.msra.mxu0 0.0
    %201 = vmatprep.subr.mxu0 0.0
    %202 = vmatpush1.msra.mxu0 0.0
    %203 = vmatprep.subr.mxu0 0.0
    %204 = vmatpush1.msra.mxu0 0.0
    %205 = vmatprep.subr.mxu0 0.0
    %206 = vmatpush1.msra.mxu0 0.0
    %207 = vmatprep.subr.mxu0 0.0
    %208 = vmatpush1.msra.mxu0 0.0
    %209 = vmatprep.mubr.f32.mxu0 0.0
    %v210 = vand.u32 %v135, 4294901760
    %v211 = vsub.f32 %v135, %v210
    %v212 = vand.u32 %v211, 4294901760
    %v213 = vsub.f32 %v211, %v212
    %v214 = vand.u32 %v213, 4294901760
    %215 = vmatmul.mubr.f32.gmra.mrb[0].mxu0 %v214
    %v216 = vpop.f32.mrb[0].mxu0
    %v217 = vadd.f32 0.0, %v216
    %v218 = vpop.f32.mrb[0].mxu0
    %219 = vdwg.mxu0
    %220 = vmatprep.subr.mxu0 0.0
    %v221 = vand.u32 %v125, 4294901760
    %v222 = vsub.f32 %v125, %v221
    %v223 = vand.u32 %v222, 4294901760
    %v224 = vsub.f32 %v222, %v223
    %v225 = vand.u32 %v224, 4294901760
    %226 = vmatpush1.msra.mxu0 %v225
    %227 = vmatprep.subr.mxu0 0.0
    %v228 = vand.u32 %v126, 4294901760
    %v229 = vsub.f32 %v126, %v228
    %v230 = vand.u32 %v229, 4294901760
    %v231 = vsub.f32 %v229, %v230
    %v232 = vand.u32 %v231, 4294901760
    %233 = vmatpush1.msra.mxu0 %v232
    %234 = vmatprep.subr.mxu0 0.0
    %v235 = vand.u32 %v127, 4294901760
    %v236 = vsub.f32 %v127, %v235
    %v237 = vand.u32 %v236, 4294901760
    %v238 = vsub.f32 %v236, %v237
    %v239 = vand.u32 %v238, 4294901760
    %240 = vmatpush1.msra.mxu0 %v239
    %241 = vmatprep.subr.mxu0 0.0
    %v242 = vand.u32 %v128, 4294901760
    %v243 = vsub.f32 %v128, %v242
    %v244 = vand.u32 %v243, 4294901760
    %v245 = vsub.f32 %v243, %v244
    %v246 = vand.u32 %v245, 4294901760
    %247 = vmatpush1.msra.mxu0 %v246
    %248 = vmatprep.subr.mxu0 0.0
    %v249 = vand.u32 %v129, 4294901760
    %v250 = vsub.f32 %v129, %v249
    %v251 = vand.u32 %v250, 4294901760
    %v252 = vsub.f32 %v250, %v251
    %v253 = vand.u32 %v252, 4294901760
    %254 = vmatpush1.msra.mxu0 %v253
    %255 = vmatprep.subr.mxu0 0.0
    %v256 = vand.u32 %v130, 4294901760
    %v257 = vsub.f32 %v130, %v256
    %v258 = vand.u32 %v257, 4294901760
    %v259 = vsub.f32 %v257, %v258
    %v260 = vand.u32 %v259, 4294901760
    %261 = vmatpush1.msra.mxu0 %v260
    %262 = vmatprep.subr.mxu0 0.0
    %v263 = vand.u32 %v131, 4294901760
    %v264 = vsub.f32 %v131, %v263
    %v265 = vand.u32 %v264, 4294901760
    %v266 = vsub.f32 %v264, %v265
    %v267 = vand.u32 %v266, 4294901760
    %268 = vmatpush1.msra.mxu0 %v267
    %269 = vmatprep.subr.mxu0 0.0
    %v270 = vand.u32 %v132, 4294901760
    %v271 = vsub.f32 %v132, %v270
    %v272 = vand.u32 %v271, 4294901760
    %v273 = vsub.f32 %v271, %v272
    %v274 = vand.u32 %v273, 4294901760
    %275 = vmatpush1.msra.mxu0 %v274
    %276 = vmatprep.subr.mxu0 0.0
    %277 = vmatpush1.msra.mxu0 0.0
    %278 = vmatprep.subr.mxu0 0.0
    %279 = vmatpush1.msra.mxu0 0.0
    %280 = vmatprep.subr.mxu0 0.0
    %281 = vmatpush1.msra.mxu0 0.0
    %282 = vmatprep.subr.mxu0 0.0
    %283 = vmatpush1.msra.mxu0 0.0
    %284 = vmatprep.subr.mxu0 0.0
    %285 = vmatpush1.msra.mxu0 0.0
    %286 = vmatprep.subr.mxu0 0.0
    %287 = vmatpush1.msra.mxu0 0.0
    %288 = vmatprep.subr.mxu0 0.0
    %289 = vmatpush1.msra.mxu0 0.0
    %290 = vmatprep.subr.mxu0 0.0
    %291 = vmatpush1.msra.mxu0 0.0
    %292 = vmatprep.subr.mxu0 0.0
    %293 = vmatpush1.msra.mxu0 0.0
    %294 = vmatprep.subr.mxu0 0.0
    %295 = vmatpush1.msra.mxu0 0.0
    %296 = vmatprep.subr.mxu0 0.0
    %297 = vmatpush1.msra.mxu0 0.0
    %298 = vmatprep.subr.mxu0 0.0
    %299 = vmatpush1.msra.mxu0 0.0
    %300 = vmatprep.subr.mxu0 0.0
    %301 = vmatpush1.msra.mxu0 0.0
    %302 = vmatprep.subr.mxu0 0.0
    %303 = vmatpush1.msra.mxu0 0.0
    %304 = vmatprep.subr.mxu0 0.0
    %305 = vmatpush1.msra.mxu0 0.0
    %306 = vmatprep.subr.mxu0 0.0
    %307 = vmatpush1.msra.mxu0 0.0
    %308 = vmatprep.subr.mxu0 0.0
    %309 = vmatpush1.msra.mxu0 0.0
    %310 = vmatprep.subr.mxu0 0.0
    %311 = vmatpush1.msra.mxu0 0.0
    %312 = vmatprep.subr.mxu0 0.0
    %313 = vmatpush1.msra.mxu0 0.0
    %314 = vmatprep.subr.mxu0 0.0
    %315 = vmatpush1.msra.mxu0 0.0
    %316 = vmatprep.subr.mxu0 0.0
    %317 = vmatpush1.msra.mxu0 0.0
    %318 = vmatprep.subr.mxu0 0.0
    %319 = vmatpush1.msra.mxu0 0.0
    %320 = vmatprep.subr.mxu0 0.0
    %321 = vmatpush1.msra.mxu0 0.0
    %322 = vmatprep.subr.mxu0 0.0
    %323 = vmatpush1.msra.mxu0 0.0
    %324 = vmatprep.mubr.f32.mxu0 0.0
    %v325 = vand.u32 %v135, 4294901760
    %326 = vmatmul.mubr.f32.gmra.mrb[0].mxu0 %v325
    %v327 = vpop.f32.mrb[0].mxu0
    %v328 = vadd.f32 %v217, %v327
    %v329 = vpop.f32.mrb[0].mxu0
    %330 = vdwg.mxu0
    %331 = vmatprep.subr.mxu0 0.0
    %v332 = vand.u32 %v125, 4294901760
    %v333 = vsub.f32 %v125, %v332
    %334 = vmatpush1.msra.mxu0 %v333
    %335 = vmatprep.subr.mxu0 0.0
    %v336 = vand.u32 %v126, 4294901760
    %v337 = vsub.f32 %v126, %v336
    %338 = vmatpush1.msra.mxu0 %v337
    %339 = vmatprep.subr.mxu0 0.0
    %v340 = vand.u32 %v127, 4294901760
    %v341 = vsub.f32 %v127, %v340
    %342 = vmatpush1.msra.mxu0 %v341
    %343 = vmatprep.subr.mxu0 0.0
    %v344 = vand.u32 %v128, 4294901760
    %v345 = vsub.f32 %v128, %v344
    %346 = vmatpush1.msra.mxu0 %v345
    %347 = vmatprep.subr.mxu0 0.0
    %v348 = vand.u32 %v129, 4294901760
    %v349 = vsub.f32 %v129, %v348
    %350 = vmatpush1.msra.mxu0 %v349
    %351 = vmatprep.subr.mxu0 0.0
    %v352 = vand.u32 %v130, 4294901760
    %v353 = vsub.f32 %v130, %v352
    %354 = vmatpush1.msra.mxu0 %v353
    %355 = vmatprep.subr.mxu0 0.0
    %v356 = vand.u32 %v131, 4294901760
    %v357 = vsub.f32 %v131, %v356
    %358 = vmatpush1.msra.mxu0 %v357
    %359 = vmatprep.subr.mxu0 0.0
    %v360 = vand.u32 %v132, 4294901760
    %v361 = vsub.f32 %v132, %v360
    %362 = vmatpush1.msra.mxu0 %v361
    %363 = vmatprep.subr.mxu0 0.0
    %364 = vmatpush1.msra.mxu0 0.0
    %365 = vmatprep.subr.mxu0 0.0
    %366 = vmatpush1.msra.mxu0 0.0
    %367 = vmatprep.subr.mxu0 0.0
    %368 = vmatpush1.msra.mxu0 0.0
    %369 = vmatprep.subr.mxu0 0.0
    %370 = vmatpush1.msra.mxu0 0.0
    %371 = vmatprep.subr.mxu0 0.0
    %372 = vmatpush1.msra.mxu0 0.0
    %373 = vmatprep.subr.mxu0 0.0
    %374 = vmatpush1.msra.mxu0 0.0
    %375 = vmatprep.subr.mxu0 0.0
    %376 = vmatpush1.msra.mxu0 0.0
    %377 = vmatprep.subr.mxu0 0.0
    %378 = vmatpush1.msra.mxu0 0.0
    %379 = vmatprep.subr.mxu0 0.0
    %380 = vmatpush1.msra.mxu0 0.0
    %381 = vmatprep.subr.mxu0 0.0
    %382 = vmatpush1.msra.mxu0 0.0
    %383 = vmatprep.subr.mxu0 0.0
    %384 = vmatpush1.msra.mxu0 0.0
    %385 = vmatprep.subr.mxu0 0.0
    %386 = vmatpush1.msra.mxu0 0.0
    %387 = vmatprep.subr.mxu0 0.0
    %388 = vmatpush1.msra.mxu0 0.0
    %389 = vmatprep.subr.mxu0 0.0
    %390 = vmatpush1.msra.mxu0 0.0
    %391 = vmatprep.subr.mxu0 0.0
    %392 = vmatpush1.msra.mxu0 0.0
    %393 = vmatprep.subr.mxu0 0.0
    %394 = vmatpush1.msra.mxu0 0.0
    %395 = vmatprep.subr.mxu0 0.0
    %396 = vmatpush1.msra.mxu0 0.0
    %397 = vmatprep.subr.mxu0 0.0
    %398 = vmatpush1.msra.mxu0 0.0
    %399 = vmatprep.subr.mxu0 0.0
    %400 = vmatpush1.msra.mxu0 0.0
    %401 = vmatprep.subr.mxu0 0.0
    %402 = vmatpush1.msra.mxu0 0.0
    %403 = vmatprep.subr.mxu0 0.0
    %404 = vmatpush1.msra.mxu0 0.0
    %405 = vmatprep.subr.mxu0 0.0
    %406 = vmatpush1.msra.mxu0 0.0
    %407 = vmatprep.subr.mxu0 0.0
    %408 = vmatpush1.msra.mxu0 0.0
    %409 = vmatprep.subr.mxu0 0.0
    %410 = vmatpush1.msra.mxu0 0.0
    %411 = vmatprep.mubr.f32.mxu0 0.0
    %v412 = vand.u32 %v135, 4294901760
    %v413 = vsub.f32 %v135, %v412
    %414 = vmatmul.mubr.f32.gmra.mrb[0].mxu0 %v413
    %v415 = vpop.f32.mrb[0].mxu0
    %v416 = vadd.f32 %v328, %v415
    %v417 = vpop.f32.mrb[0].mxu0
    %418 = vdwg.mxu0
    %419 = vmatprep.subr.mxu0 0.0
    %v420 = vand.u32 %v125, 4294901760
    %421 = vmatpush1.msra.mxu0 %v420
    %422 = vmatprep.subr.mxu0 0.0
    %v423 = vand.u32 %v126, 4294901760
    %424 = vmatpush1.msra.mxu0 %v423
    %425 = vmatprep.subr.mxu0 0.0
    %v426 = vand.u32 %v127, 4294901760
    %427 = vmatpush1.msra.mxu0 %v426
    %428 = vmatprep.subr.mxu0 0.0
    %v429 = vand.u32 %v128, 4294901760
    %430 = vmatpush1.msra.mxu0 %v429
    %431 = vmatprep.subr.mxu0 0.0
    %v432 = vand.u32 %v129, 4294901760
    %433 = vmatpush1.msra.mxu0 %v432
    %434 = vmatprep.subr.mxu0 0.0
    %v435 = vand.u32 %v130, 4294901760
    %436 = vmatpush1.msra.mxu0 %v435
    %437 = vmatprep.subr.mxu0 0.0
    %v438 = vand.u32 %v131, 4294901760
    %439 = vmatpush1.msra.mxu0 %v438
    %440 = vmatprep.subr.mxu0 0.0
    %v441 = vand.u32 %v132, 4294901760
    %442 = vmatpush1.msra.mxu0 %v441
    %443 = vmatprep.subr.mxu0 0.0
    %444 = vmatpush1.msra.mxu0 0.0
    %445 = vmatprep.subr.mxu0 0.0
    %446 = vmatpush1.msra.mxu0 0.0
    %447 = vmatprep.subr.mxu0 0.0
    %448 = vmatpush1.msra.mxu0 0.0
    %449 = vmatprep.subr.mxu0 0.0
    %450 = vmatpush1.msra.mxu0 0.0
    %451 = vmatprep.subr.mxu0 0.0
    %452 = vmatpush1.msra.mxu0 0.0
    %453 = vmatprep.subr.mxu0 0.0
    %454 = vmatpush1.msra.mxu0 0.0
    %455 = vmatprep.subr.mxu0 0.0
    %456 = vmatpush1.msra.mxu0 0.0
    %457 = vmatprep.subr.mxu0 0.0
    %458 = vmatpush1.msra.mxu0 0.0
    %459 = vmatprep.subr.mxu0 0.0
    %460 = vmatpush1.msra.mxu0 0.0
    %461 = vmatprep.subr.mxu0 0.0
    %462 = vmatpush1.msra.mxu0 0.0
    %463 = vmatprep.subr.mxu0 0.0
    %464 = vmatpush1.msra.mxu0 0.0
    %465 = vmatprep.subr.mxu0 0.0
    %466 = vmatpush1.msra.mxu0 0.0
    %467 = vmatprep.subr.mxu0 0.0
    %468 = vmatpush1.msra.mxu0 0.0
    %469 = vmatprep.subr.mxu0 0.0
    %470 = vmatpush1.msra.mxu0 0.0
    %471 = vmatprep.subr.mxu0 0.0
    %472 = vmatpush1.msra.mxu0 0.0
    %473 = vmatprep.subr.mxu0 0.0
    %474 = vmatpush1.msra.mxu0 0.0
    %475 = vmatprep.subr.mxu0 0.0
    %476 = vmatpush1.msra.mxu0 0.0
    %477 = vmatprep.subr.mxu0 0.0
    %478 = vmatpush1.msra.mxu0 0.0
    %479 = vmatprep.subr.mxu0 0.0
    %480 = vmatpush1.msra.mxu0 0.0
    %481 = vmatprep.subr.mxu0 0.0
    %482 = vmatpush1.msra.mxu0 0.0
    %483 = vmatprep.subr.mxu0 0.0
    %484 = vmatpush1.msra.mxu0 0.0
    %485 = vmatprep.subr.mxu0 0.0
    %486 = vmatpush1.msra.mxu0 0.0
    %487 = vmatprep.subr.mxu0 0.0
    %488 = vmatpush1.msra.mxu0 0.0
    %489 = vmatprep.subr.mxu0 0.0
    %490 = vmatpush1.msra.mxu0 0.0
    %491 = vmatprep.mubr.f32.mxu0 0.0
    %v492 = vand.u32 %v135, 4294901760
    %v493 = vsub.f32 %v135, %v492
    %v494 = vand.u32 %v493, 4294901760
    %495 = vmatmul.mubr.f32.gmra.mrb[0].mxu0 %v494
    %v496 = vpop.f32.mrb[0].mxu0
    %v497 = vadd.f32 %v416, %v496
    %v498 = vpop.f32.mrb[0].mxu0
    %499 = vdwg.mxu0
    %500 = vmatprep.subr.mxu0 0.0
    %v501 = vand.u32 %v125, 4294901760
    %v502 = vsub.f32 %v125, %v501
    %v503 = vand.u32 %v502, 4294901760
    %504 = vmatpush1.msra.mxu0 %v503
    %505 = vmatprep.subr.mxu0 0.0
    %v506 = vand.u32 %v126, 4294901760
    %v507 = vsub.f32 %v126, %v506
    %v508 = vand.u32 %v507, 4294901760
    %509 = vmatpush1.msra.mxu0 %v508
    %510 = vmatprep.subr.mxu0 0.0
    %v511 = vand.u32 %v127, 4294901760
    %v512 = vsub.f32 %v127, %v511
    %v513 = vand.u32 %v512, 4294901760
    %514 = vmatpush1.msra.mxu0 %v513
    %515 = vmatprep.subr.mxu0 0.0
    %v516 = vand.u32 %v128, 4294901760
    %v517 = vsub.f32 %v128, %v516
    %v518 = vand.u32 %v517, 4294901760
    %519 = vmatpush1.msra.mxu0 %v518
    %520 = vmatprep.subr.mxu0 0.0
    %v521 = vand.u32 %v129, 4294901760
    %v522 = vsub.f32 %v129, %v521
    %v523 = vand.u32 %v522, 4294901760
    %524 = vmatpush1.msra.mxu0 %v523
    %525 = vmatprep.subr.mxu0 0.0
    %v526 = vand.u32 %v130, 4294901760
    %v527 = vsub.f32 %v130, %v526
    %v528 = vand.u32 %v527, 4294901760
    %529 = vmatpush1.msra.mxu0 %v528
    %530 = vmatprep.subr.mxu0 0.0
    %v531 = vand.u32 %v131, 4294901760
    %v532 = vsub.f32 %v131, %v531
    %v533 = vand.u32 %v532, 4294901760
    %534 = vmatpush1.msra.mxu0 %v533
    %535 = vmatprep.subr.mxu0 0.0
    %v536 = vand.u32 %v132, 4294901760
    %v537 = vsub.f32 %v132, %v536
    %v538 = vand.u32 %v537, 4294901760
    %539 = vmatpush1.msra.mxu0 %v538
    %540 = vmatprep.subr.mxu0 0.0
    %541 = vmatpush1.msra.mxu0 0.0
    %542 = vmatprep.subr.mxu0 0.0
    %543 = vmatpush1.msra.mxu0 0.0
    %544 = vmatprep.subr.mxu0 0.0
    %545 = vmatpush1.msra.mxu0 0.0
    %546 = vmatprep.subr.mxu0 0.0
    %547 = vmatpush1.msra.mxu0 0.0
    %548 = vmatprep.subr.mxu0 0.0
    %549 = vmatpush1.msra.mxu0 0.0
    %550 = vmatprep.subr.mxu0 0.0
    %551 = vmatpush1.msra.mxu0 0.0
    %552 = vmatprep.subr.mxu0 0.0
    %553 = vmatpush1.msra.mxu0 0.0
    %554 = vmatprep.subr.mxu0 0.0
    %555 = vmatpush1.msra.mxu0 0.0
    %556 = vmatprep.subr.mxu0 0.0
    %557 = vmatpush1.msra.mxu0 0.0
    %558 = vmatprep.subr.mxu0 0.0
    %559 = vmatpush1.msra.mxu0 0.0
    %560 = vmatprep.subr.mxu0 0.0
    %561 = vmatpush1.msra.mxu0 0.0
    %562 = vmatprep.subr.mxu0 0.0
    %563 = vmatpush1.msra.mxu0 0.0
    %564 = vmatprep.subr.mxu0 0.0
    %565 = vmatpush1.msra.mxu0 0.0
    %566 = vmatprep.subr.mxu0 0.0
    %567 = vmatpush1.msra.mxu0 0.0
    %568 = vmatprep.subr.mxu0 0.0
    %569 = vmatpush1.msra.mxu0 0.0
    %570 = vmatprep.subr.mxu0 0.0
    %571 = vmatpush1.msra.mxu0 0.0
    %572 = vmatprep.subr.mxu0 0.0
    %573 = vmatpush1.msra.mxu0 0.0
    %574 = vmatprep.subr.mxu0 0.0
    %575 = vmatpush1.msra.mxu0 0.0
    %576 = vmatprep.subr.mxu0 0.0
    %577 = vmatpush1.msra.mxu0 0.0
    %578 = vmatprep.subr.mxu0 0.0
    %579 = vmatpush1.msra.mxu0 0.0
    %580 = vmatprep.subr.mxu0 0.0
    %581 = vmatpush1.msra.mxu0 0.0
    %582 = vmatprep.subr.mxu0 0.0
    %583 = vmatpush1.msra.mxu0 0.0
    %584 = vmatprep.subr.mxu0 0.0
    %585 = vmatpush1.msra.mxu0 0.0
    %586 = vmatprep.subr.mxu0 0.0
    %587 = vmatpush1.msra.mxu0 0.0
    %588 = vmatprep.mubr.f32.mxu0 0.0
    %v589 = vand.u32 %v135, 4294901760
    %590 = vmatmul.mubr.f32.gmra.mrb[0].mxu0 %v589
    %v591 = vpop.f32.mrb[0].mxu0
    %v592 = vadd.f32 %v497, %v591
    %v593 = vpop.f32.mrb[0].mxu0
    %594 = vdwg.mxu0
    %595 = vmatprep.subr.mxu0 0.0
    %v596 = vand.u32 %v125, 4294901760
    %597 = vmatpush1.msra.mxu0 %v596
    %598 = vmatprep.subr.mxu0 0.0
    %v599 = vand.u32 %v126, 4294901760
    %600 = vmatpush1.msra.mxu0 %v599
    %601 = vmatprep.subr.mxu0 0.0
    %v602 = vand.u32 %v127, 4294901760
    %603 = vmatpush1.msra.mxu0 %v602
    %604 = vmatprep.subr.mxu0 0.0
    %v605 = vand.u32 %v128, 4294901760
    %606 = vmatpush1.msra.mxu0 %v605
    %607 = vmatprep.subr.mxu0 0.0
    %v608 = vand.u32 %v129, 4294901760
    %609 = vmatpush1.msra.mxu0 %v608
    %610 = vmatprep.subr.mxu0 0.0
    %v611 = vand.u32 %v130, 4294901760
    %612 = vmatpush1.msra.mxu0 %v611
    %613 = vmatprep.subr.mxu0 0.0
    %v614 = vand.u32 %v131, 4294901760
    %615 = vmatpush1.msra.mxu0 %v614
    %616 = vmatprep.subr.mxu0 0.0
    %v617 = vand.u32 %v132, 4294901760
    %618 = vmatpush1.msra.mxu0 %v617
    %619 = vmatprep.subr.mxu0 0.0
    %620 = vmatpush1.msra.mxu0 0.0
    %621 = vmatprep.subr.mxu0 0.0
    %622 = vmatpush1.msra.mxu0 0.0
    %623 = vmatprep.subr.mxu0 0.0
    %624 = vmatpush1.msra.mxu0 0.0
    %625 = vmatprep.subr.mxu0 0.0
    %626 = vmatpush1.msra.mxu0 0.0
    %627 = vmatprep.subr.mxu0 0.0
    %628 = vmatpush1.msra.mxu0 0.0
    %629 = vmatprep.subr.mxu0 0.0
    %630 = vmatpush1.msra.mxu0 0.0
    %631 = vmatprep.subr.mxu0 0.0
    %632 = vmatpush1.msra.mxu0 0.0
    %633 = vmatprep.subr.mxu0 0.0
    %634 = vmatpush1.msra.mxu0 0.0
    %635 = vmatprep.subr.mxu0 0.0
    %636 = vmatpush1.msra.mxu0 0.0
    %637 = vmatprep.subr.mxu0 0.0
    %638 = vmatpush1.msra.mxu0 0.0
    %639 = vmatprep.subr.mxu0 0.0
    %640 = vmatpush1.msra.mxu0 0.0
    %641 = vmatprep.subr.mxu0 0.0
    %642 = vmatpush1.msra.mxu0 0.0
    %643 = vmatprep.subr.mxu0 0.0
    %644 = vmatpush1.msra.mxu0 0.0
    %645 = vmatprep.subr.mxu0 0.0
    %646 = vmatpush1.msra.mxu0 0.0
    %647 = vmatprep.subr.mxu0 0.0
    %648 = vmatpush1.msra.mxu0 0.0
    %649 = vmatprep.subr.mxu0 0.0
    %650 = vmatpush1.msra.mxu0 0.0
    %651 = vmatprep.subr.mxu0 0.0
    %652 = vmatpush1.msra.mxu0 0.0
    %653 = vmatprep.subr.mxu0 0.0
    %654 = vmatpush1.msra.mxu0 0.0
    %655 = vmatprep.subr.mxu0 0.0
    %656 = vmatpush1.msra.mxu0 0.0
    %657 = vmatprep.subr.mxu0 0.0
    %658 = vmatpush1.msra.mxu0 0.0
    %659 = vmatprep.subr.mxu0 0.0
    %660 = vmatpush1.msra.mxu0 0.0
    %661 = vmatprep.subr.mxu0 0.0
    %662 = vmatpush1.msra.mxu0 0.0
    %663 = vmatprep.subr.mxu0 0.0
    %664 = vmatpush1.msra.mxu0 0.0
    %665 = vmatprep.subr.mxu0 0.0
    %666 = vmatpush1.msra.mxu0 0.0
    %667 = vmatprep.mubr.f32.mxu0 0.0
    %v668 = vand.u32 %v135, 4294901760
    %669 = vmatmul.mubr.f32.gmra.mrb[0].mxu0 %v668
    %v670 = vpop.f32.mrb[0].mxu0
    %v671 = vadd.f32 %v592, %v670
    %v672 = vpop.f32.mrb[0].mxu0
    %673 = vdwg.mxu0
    %674 = vst [vmem:[#allocation8] sm:$0xff] %v671
    // Predicated region
    $region18: #{tpu_custom_call.1} parent=1 // pred_check
      _
    $region19: #{tpu_custom_call.1} parent=1 // pred_check_branch
      %676 = sbr.rel (0) target = $region21
    $region20: #{tpu_custom_call.1} parent=1 // pred_region
      %s678 = ssub.s32 128, 128
      %679 = vsyncadd [#allocation5], %s678
      %s681 = sshll.u32 [#allocation8], 4
      %s682 = int_to_ptr.vmem [resolvable:$true] %s681
      %684 = dma.vmem_to_hbm [thread:$0]  %s682, 128, %s2, [#allocation5]
    $region21: #{tpu_custom_call.1} parent=1 // pred_fallthru
      _
    // Predicated region
    $region22: #{tpu_custom_call.1} parent=1 // pred_check
      _
    $region23: #{tpu_custom_call.1} parent=1 // pred_check_branch
      %686 = sbr.rel (0) target = $region25
    $region24: #{tpu_custom_call.1} parent=1 // pred_region
      %687 = dma.done [#allocation5], 128
    $region25: #{tpu_custom_call.1} parent=1 // pred_fallthru
      _
    %688 = vsyncpa [#allocation4], 1
    %689 = vsyncpa [#allocation7], 1
    %690 = vsyncpa [#allocation5], 1

</llo_original>
